<compile_context>
chip_gen: v6e
topology: v6e:2x2x1
jax: 0.10.0
libtpu: 0.0.40
codegen_flags: <defaults>
</compile_context>

<pallas_src>
import functools

import jax
import jax.numpy as jnp
from jax.experimental import pallas as pl
from jax.experimental.pallas import tpu as pltpu


def _round_up(x: int, m: int) -> int:
    return ((x + m - 1) // m) * m


def _default_vmem_limit_bytes() -> int:
    """~3/4 of physical VMEM: ~48 MiB on v7x, ~96 MiB on v5e/v6e."""
    try:
        cap = pltpu.get_tpu_info().vmem_capacity_bytes
    except Exception:
        cap = 64 * 1024 * 1024          # conservative (v7x physical)
    return min(int(cap * 3 // 4), 100 * 1024 * 1024)


# --------------------------------------------------------------------------- #
# Kernel
# --------------------------------------------------------------------------- #
def _consequent_kernel(x_ref, w_ref, b_ref, out_ref):
    # x_ref : (TB, d_in)   VMEM  batch tile of inputs
    # w_ref : (d_in, TN)   VMEM  weight tile, columns flat-ordered as (d_out, d_rule)
    # b_ref : (1, TN)      VMEM  bias row (coeff[..., d_in], same ordering)
    # out   : (TB, TN)     VMEM  lane-dense output tile
    acc = jax.lax.dot_general(
        x_ref[...],
        w_ref[...],
        dimension_numbers=(((1,), (0,)), ((), ())),   # canonical (TB,K)x(K,TN)
        preferred_element_type=jnp.float32,
    )
    out_ref[...] = acc + b_ref[...]                   # fused bias (VPU, free filler)


# --------------------------------------------------------------------------- #
# One-time parameter preparation (hoist / cache alongside the parameter)
# --------------------------------------------------------------------------- #
def prepare_consequent_params(coeff, *, batch_tile=512, n_tile_max=8192,
                              vmem_limit_bytes=None):
    """Split bias, transpose to (d_in, N), pad to the tiled output width.

    Returns (w, b, meta); cache the result so this weight-sized pass does not
    run on every forward call.
    """
    d_rule, d_out, k1 = coeff.shape
    d_in = k1 - 1
    N = d_out * d_rule

    batch_tile = max(8, _round_up(int(batch_tile), 8))
    vmem_limit = int(vmem_limit_bytes) if vmem_limit_bytes else _default_vmem_limit_bytes()

    # Output-width tile TN: double-buffered (x, out, w, b) blocks for the
    # worst-case batch tile must fit in ~half the VMEM limit.
    budget_f32 = (vmem_limit // 2) // (4 * 2)                     # floats, single set
    tn_cap = (budget_f32 - batch_tile * d_in) // (batch_tile + d_in + 1)
    tn_cap = max(128, min(int(n_tile_max), (int(tn_cap) // 128) * 128))

    n_pad128 = _round_up(N, 128)                                  # lane-dense width
    n_n_tiles = pl.cdiv(n_pad128, tn_cap)
    TN = _round_up(pl.cdiv(n_pad128, n_n_tiles), 128)             # balanced N tiles
    n_n_tiles = pl.cdiv(n_pad128, TN)
    N_grid = n_n_tiles * TN

    # w[k, o*d_rule + r] = coeff[r, o, k]; b[0, o*d_rule + r] = coeff[r, o, d_in]
    w = jnp.transpose(coeff[..., :d_in], (2, 1, 0)).reshape(d_in, N)
    b = jnp.transpose(coeff[..., d_in], (1, 0)).reshape(1, N)
    if N_grid != N:
        w = jnp.pad(w, ((0, 0), (0, N_grid - N)))
        b = jnp.pad(b, ((0, 0), (0, N_grid - N)))

    meta = dict(d_in=d_in, d_rule=d_rule, d_out=d_out, N=N, N_grid=N_grid,
                TN=TN, n_n_tiles=n_n_tiles, batch_tile=batch_tile,
                vmem_limit=vmem_limit)
    return w, b, meta


# --------------------------------------------------------------------------- #
# Forward with pre-prepared parameters
# --------------------------------------------------------------------------- #
def consequent_layer_apply(x, w, b, meta):
    B, d_in = x.shape
    assert d_in == meta["d_in"], (d_in, meta["d_in"])
    d_out, d_rule = meta["d_out"], meta["d_rule"]
    N, N_grid, TN, n_n_tiles = meta["N"], meta["N_grid"], meta["TN"], meta["n_n_tiles"]
    batch_tile, vmem_limit = meta["batch_tile"], meta["vmem_limit"]

    # Balanced batch tiles (multiples of 8); >=2 tiles when possible so v7x's
    # two TensorCores both get work via the "parallel" grid axes.
    B8 = _round_up(B, 8)
    min_b_tiles = 2 if B8 >= 16 else 1
    n_b_tiles = max(pl.cdiv(B8, batch_tile), min_b_tiles)
    TB = _round_up(pl.cdiv(B8, n_b_tiles), 8)
    n_b_tiles = pl.cdiv(B8, TB)
    B_pad = n_b_tiles * TB
    x_pad = jnp.pad(x, ((0, B_pad - B), (0, 0))) if B_pad != B else x

    out_flat = pl.pallas_call(
        _consequent_kernel,
        out_shape=jax.ShapeDtypeStruct((B_pad, N_grid), jnp.float32),
        grid=(n_b_tiles, n_n_tiles),
        in_specs=[
            pl.BlockSpec((TB, d_in), lambda i, j: (i, 0)),   # x: tiled over batch
            pl.BlockSpec((d_in, TN), lambda i, j: (0, j)),   # W: tiled over output width
            pl.BlockSpec((1, TN), lambda i, j: (0, j)),      # bias row
        ],
        out_specs=pl.BlockSpec((TB, TN), lambda i, j: (i, j)),
        compiler_params=pltpu.CompilerParams(
            dimension_semantics=("parallel", "parallel"),    # megacore-shardable
            vmem_limit_bytes=vmem_limit,
        ),
        cost_estimate=pl.CostEstimate(                       # actual (padded) traffic
            flops=2 * B_pad * N_grid * d_in + B_pad * N_grid,
            transcendentals=0,
            bytes_accessed=4 * (B_pad * d_in + d_in * N_grid + N_grid
                                + B_pad * N_grid),
        ),
    )(x_pad, w, b)

    # Exact-fit fast path: no slice pass at all when nothing was padded.
    if B_pad != B or N_grid != N:
        out_flat = out_flat[:B, :N]
    return out_flat.reshape(B, d_out, d_rule)                # free (row-major) reshape


# --------------------------------------------------------------------------- #
# Convenience wrapper matching the module signature (prep not cached here)
# --------------------------------------------------------------------------- #
def consequent_layer_forward(x, coeff, *, batch_tile=512, n_tile_max=8192,
                             vmem_limit_bytes=None):
    """Pallas implementation of ConsequentLayer.forward.

    x     : (B, d_in)               float32
    coeff : (d_rule, d_out, d_in+1) float32
    returns (B, d_out, d_rule)      float32
    """
    w, b, meta = prepare_consequent_params(
        coeff, batch_tile=batch_tile, n_tile_max=n_tile_max,
        vmem_limit_bytes=vmem_limit_bytes)
    return consequent_layer_apply(x, w, b, meta)


def consequent_layer_reference(x, coeff):
    """Pure-JAX reference mirroring the PyTorch code."""
    B = x.shape[0]
    x_plus = jnp.concatenate([x, jnp.ones((B, 1), dtype=x.dtype)], axis=1)
    y_pred = jnp.matmul(coeff, x_plus.T)          # (d_rule, d_out, B)
    return jnp.transpose(y_pred, (2, 1, 0))       # (B, d_out, d_rule)


if __name__ == "__main__":
    key = jax.random.PRNGKey(0)

    # (B, d_in, d_rule, d_out): small shapes consistent with the module.
    # Case 1: module-like demo shapes (lane padding + single batch tile).
    # Case 2: exact-fit path (N = 128, B multiple of 8, two batch tiles).
    # Case 3: ragged shapes (batch + lane padding, balanced batch tiles).
    cases = [
        (8, 4, 16, 3),
        (16, 4, 16, 8),
        (41, 5, 10, 7),
    ]

    ok = True
    for (B, d_in, d_rule, d_out) in cases:
        key, kx, kc = jax.random.split(key, 3)
        x = jax.random.normal(kx, (B, d_in), dtype=jnp.float32)
        # The module initializes coefficients to zeros; use deterministic random
        # values instead so the matmul result is non-trivial (synthetic params).
        coeff = jax.random.normal(kc, (d_rule, d_out, d_in + 1), dtype=jnp.float32)

        # Prep once (cacheable), apply the kernel.
        w, b, meta = prepare_consequent_params(coeff)
        out = consequent_layer_apply(x, w, b, meta)
        out = jax.block_until_ready(out)

        ref = consequent_layer_reference(x, coeff)
        ok &= out.shape == (B, d_out, d_rule)
        ok &= bool(jnp.allclose(out, ref, atol=1e-5, rtol=1e-5))
        assert ok, f"mismatch vs reference for case {(B, d_in, d_rule, d_out)}"

    print("KERNEL_OK")
</pallas_src>

<mosaic_0001>
module attributes {stable_mosaic.version = 11 : i64} {
  func.func @_consequent_kernel(%arg0: i32, %arg1: i32, %arg2: memref<8x4xf32, #tpu.memory_space<vmem>>, %arg3: memref<4x128xf32, #tpu.memory_space<vmem>>, %arg4: memref<1x128xf32, #tpu.memory_space<vmem>>, %arg5: memref<8x128xf32, #tpu.memory_space<vmem>>) attributes {dimension_semantics = [#tpu.dimension_semantics<parallel>, #tpu.dimension_semantics<parallel>], iteration_bounds = array<i64: 1, 1>, scalar_prefetch = 0 : i64, scratch_operands = 0 : i64, tpu.core_type = #tpu.core_type<tc>, window_params = [{transform_indices = @transform_0, window_bounds = array<i64: 8, 4>}, {transform_indices = @transform_1, window_bounds = array<i64: 4, 128>}, {transform_indices = @transform_2, window_bounds = array<i64: 1, 128>}, {transform_indices = @transform_3, window_bounds = array<i64: 8, 128>}]} {
    %c0 = arith.constant 0 : index
    %c0_0 = arith.constant 0 : index
    %0 = vector.load %arg2[%c0, %c0_0] : memref<8x4xf32, #tpu.memory_space<vmem>>, vector<8x4xf32>
    %c0_1 = arith.constant 0 : index
    %c0_2 = arith.constant 0 : index
    %1 = vector.load %arg3[%c0_1, %c0_2] : memref<4x128xf32, #tpu.memory_space<vmem>>, vector<4x128xf32>
    %cst = arith.constant dense<0.000000e+00> : vector<8x128xf32>
    %2 = tpu.matmul %0, %1, %cst {dimension_numbers = #tpu.dot_dimension_numbers<[1], [0], [0], [1], [0, 0, 1, 1], [], []>} : vector<8x4xf32>, vector<4x128xf32>, vector<8x128xf32> -> vector<8x128xf32>
    %c0_3 = arith.constant 0 : index
    %c0_4 = arith.constant 0 : index
    %3 = vector.load %arg4[%c0_3, %c0_4] : memref<1x128xf32, #tpu.memory_space<vmem>>, vector<1x128xf32>
    %4 = vector.broadcast %3 : vector<1x128xf32> to vector<8x128xf32>
    %5 = arith.addf %2, %4 : vector<8x128xf32>
    %c0_5 = arith.constant 0 : index
    %c0_6 = arith.constant 0 : index
    %6 = vector.load %arg5[%c0_5, %c0_6] : memref<8x128xf32, #tpu.memory_space<vmem>>, vector<8x128xf32>
    tpu.vector_store %arg5[%c0_5, %c0_6], %5 {strides = array<i32>} : memref<8x128xf32, #tpu.memory_space<vmem>>, vector<8x128xf32>,
    return
  }
  func.func @transform_0(%arg0: i32, %arg1: i32) -> (i32, i32) {
    %c0_i32 = arith.constant 0 : i32
    %c0_i32_0 = arith.constant 0 : i32
    return %arg0, %c0_i32 : i32, i32
  }
  func.func @transform_1(%arg0: i32, %arg1: i32) -> (i32, i32) {
    %c0_i32 = arith.constant 0 : i32
    %c0_i32_0 = arith.constant 0 : i32
    return %c0_i32, %arg1 : i32, i32
  }
  func.func @transform_2(%arg0: i32, %arg1: i32) -> (i32, i32) {
    %c0_i32 = arith.constant 0 : i32
    %c0_i32_0 = arith.constant 0 : i32
    return %c0_i32, %arg1 : i32, i32
  }
  func.func @transform_3(%arg0: i32, %arg1: i32) -> (i32, i32) {
    %c0_i32 = arith.constant 0 : i32
    return %arg0, %arg1 : i32, i32
  }
}

</mosaic_0001>

<llo_original>
// kernel: tpu_custom_call.1
$region0: #{tpu_custom_call.1}
  #allocation0 [shape = 'u32[]', space=smem, size = 0x4, offset = 0x4, fixed_abs, tag = 'smem constant byte address 0x4 - core index']
  #allocation1 [shape = 'u32[144,128]{1,0:T(1,128)}', space=vmem, size = 0x12000, scoped, tag = 'internal scratch']
  %s0 = inlined_call_operand.vmem [shape: f32[8,4], index: 0, kind: input, shape index: {}]
  %s1 = inlined_call_operand.vmem [shape: f32[4,128], index: 1, kind: input, shape index: {}]
  %s2 = inlined_call_operand.vmem [shape: f32[1,128], index: 2, kind: input, shape index: {}]
  %s3 = inlined_call_operand.hbm [shape: f32[8,128], index: 3, kind: output, shape index: {}]
  %s4 = sld [smem:[#allocation0]]
  $region22: #{tpu_custom_call.1} parent=0
    _
  %s6 = ssub.s32 1, %s4
  %s7 = scalar_select 0, %s6, %s4
  $region1: #{tpu_custom_call.1} parent=0
    #allocation2 [shape = 'u8[4096]{0}', space=vmem, size = 0x1000, scoped, tag = 'output window, operand 0, single buffered']
    #allocation3 [shape = 's32[1]{0}', space=sflag, size = 0x4, scoped, tag = 'scoped memory for tpu_custom_call.1']
    %8 = vsyncpa [#allocation3], 0
    // Predicated region
    $region2: #{tpu_custom_call.1} parent=1 // pred_check
      _
    $region3: #{tpu_custom_call.1} parent=1 // pred_check_branch
      %10 = sbr.rel (0) target = $region5
    $region4: #{tpu_custom_call.1} parent=1 // pred_region
      _
    $region5: #{tpu_custom_call.1} parent=1 // pred_fallthru
      _
    // Predicated region
    $region6: #{tpu_custom_call.1} parent=1 // pred_check
      _
    $region7: #{tpu_custom_call.1} parent=1 // pred_check_branch
      %12 = sbr.rel (0) target = $region9
    $region8: #{tpu_custom_call.1} parent=1 // pred_region
      _
    $region9: #{tpu_custom_call.1} parent=1 // pred_fallthru
      _
    // Predicated region
    $region10: #{tpu_custom_call.1} parent=1 // pred_check
      _
    $region11: #{tpu_custom_call.1} parent=1 // pred_check_branch
      %14 = sbr.rel (0) target = $region13
    $region12: #{tpu_custom_call.1} parent=1 // pred_region
      _
    $region13: #{tpu_custom_call.1} parent=1 // pred_fallthru
      _
    %v15 = vld [vmem:[%s0] sm:$0xff]
    %v16 = vld [vmem:[%s1] sm:$0xf]
    %v17 = vld [vmem:[%s2] sm:$0x1]
    %v19 = vlaneseq
    %v20 = vshrl.u32 %v19, 7
    %v21 = vsub.s32 0, %v20
    %v22 = vrot.slane %v17, %v21
    %vm24 = vcmask 31744
    %v26 = vsel %vm24, %v15, 0
    %vm28 = vcmask 1043456
    %v30 = vsel %vm28, %v16, 0
    %32 = vmatprep.subr.mxu0 0.0
    %33 = vmatpush1.msra.mxu0 0.0
    %34 = vmatprep.subr.mxu0 0.0
    %35 = vmatpush1.msra.mxu0 0.0
    %36 = vmatprep.subr.mxu0 0.0
    %37 = vmatpush1.msra.mxu0 0.0
    %38 = vmatprep.subr.mxu0 0.0
    %39 = vmatpush1.msra.mxu0 0.0
    %40 = vmatprep.subr.mxu0 0.0
    %41 = vmatpush1.msra.mxu0 0.0
    %42 = vmatprep.subr.mxu0 0.0
    %43 = vmatpush1.msra.mxu0 0.0
    %44 = vmatprep.subr.mxu0 0.0
    %45 = vmatpush1.msra.mxu0 0.0
    %46 = vmatprep.subr.mxu0 0.0
    %47 = vmatpush1.msra.mxu0 0.0
    %48 = vmatprep.subr.mxu0 0.0
    %49 = vmatpush1.msra.mxu0 0.0
    %50 = vmatprep.subr.mxu0 0.0
    %51 = vmatpush1.msra.mxu0 0.0
    %52 = vmatprep.subr.mxu0 0.0
    %53 = vmatpush1.msra.mxu0 0.0
    %54 = vmatprep.subr.mxu0 0.0
    %55 = vmatpush1.msra.mxu0 0.0
    %56 = vmatprep.subr.mxu0 0.0
    %57 = vmatpush1.msra.mxu0 0.0
    %58 = vmatprep.subr.mxu0 0.0
    %59 = vmatpush1.msra.mxu0 0.0
    %60 = vmatprep.subr.mxu0 0.0
    %61 = vmatpush1.msra.mxu0 0.0
    %62 = vmatprep.subr.mxu0 0.0
    %63 = vmatpush1.msra.mxu0 %v30
    %64 = vmatprep.subr.mxu0 0.0
    %65 = vmatpush2.msra.mxu0 0.0
    %66 = vmatprep.subr.mxu0 0.0
    %67 = vmatpush2.msra.mxu0 0.0
    %68 = vmatprep.subr.mxu0 0.0
    %69 = vmatpush2.msra.mxu0 0.0
    %70 = vmatprep.subr.mxu0 0.0
    %71 = vmatpush2.msra.mxu0 0.0
    %72 = vmatprep.subr.mxu0 0.0
    %73 = vmatpush2.msra.mxu0 0.0
    %74 = vmatprep.subr.mxu0 0.0
    %75 = vmatpush2.msra.mxu0 0.0
    %76 = vmatprep.subr.mxu0 0.0
    %77 = vmatpush2.msra.mxu0 0.0
    %78 = vmatprep.subr.mxu0 0.0
    %79 = vmatpush2.msra.mxu0 0.0
    %80 = vmatprep.subr.mxu0 0.0
    %81 = vmatpush2.msra.mxu0 0.0
    %82 = vmatprep.subr.mxu0 0.0
    %83 = vmatpush2.msra.mxu0 0.0
    %84 = vmatprep.subr.mxu0 0.0
    %85 = vmatpush2.msra.mxu0 0.0
    %86 = vmatprep.subr.mxu0 0.0
    %87 = vmatpush2.msra.mxu0 0.0
    %88 = vmatprep.subr.mxu0 0.0
    %89 = vmatpush2.msra.mxu0 0.0
    %90 = vmatprep.subr.mxu0 0.0
    %91 = vmatpush2.msra.mxu0 0.0
    %92 = vmatprep.subr.mxu0 0.0
    %93 = vmatpush2.msra.mxu0 0.0
    %94 = vmatprep.subr.mxu0 0.0
    %95 = vmatpush2.msra.mxu0 0.0
    %96 = vmatprep.mubr.f32.mxu0 0.0
    %97 = vmatmul.mubr.f32.gmra.mxu0 %v26
    %v98 = vpop.f32.mrf.mxu0
    %v99 = vadd.f32 %v22, %v98
    %v100 = vpop.f32.mrf.mxu0
    %101 = vdwg.mxu0
    %102 = vst [vmem:[#allocation2] sm:$0xff] %v99
    // Predicated region
    $region14: #{tpu_custom_call.1} parent=1 // pred_check
      _
    $region15: #{tpu_custom_call.1} parent=1 // pred_check_branch
      %104 = sbr.rel (0) target = $region17
    $region16: #{tpu_custom_call.1} parent=1 // pred_region
      %s106 = ssub.s32 128, 128
      %107 = vsyncadd [#allocation3], %s106
      %s109 = sshll.u32 [#allocation2], 4
      %s110 = int_to_ptr.vmem [resolvable:$true] %s109
      %112 = dma.vmem_to_hbm [thread:$0]  %s110, 128, %s3, [#allocation3]
    $region17: #{tpu_custom_call.1} parent=1 // pred_fallthru
      _
    // Predicated region
    $region18: #{tpu_custom_call.1} parent=1 // pred_check
      _
    $region19: #{tpu_custom_call.1} parent=1 // pred_check_branch
      %114 = sbr.rel (0) target = $region21
    $region20: #{tpu_custom_call.1} parent=1 // pred_region
      %115 = dma.done [#allocation3], 128
    $region21: #{tpu_custom_call.1} parent=1 // pred_fallthru
      _
    %116 = vsyncpa [#allocation3], 1

</llo_original>
